<compile_context>
chip_gen: v7x
topology: tpu7x:2x2x1
jax: 0.10.0
libtpu: 0.0.40
codegen_flags: <defaults>
</compile_context>

<pallas_src>
import functools

import jax
import jax.numpy as jnp
from jax.experimental import pallas as pl
from jax.experimental.pallas import tpu as pltpu

LN_EPS = 1e-5  # torch.nn.LayerNorm default


def _round_up(v, m):
    return ((v + m - 1) // m) * m


def _vmem_capacity_bytes():
    try:
        cap = getattr(pltpu.get_tpu_info(), "vmem_capacity_bytes", None)
        if cap:
            return int(cap)
    except Exception:
        pass
    return 64 * 1024 * 1024  # conservative default (v7x per-core VMEM)


def _pool_ln_linear(pooled, gamma_ref, beta_ref, w_ref, bias_ref, o_ref):
    # pooled: (TB, D) f32 token-mean -> LayerNorm -> Linear -> o_ref (TB, Cp).
    mu = jnp.mean(pooled, axis=-1, keepdims=True)
    xc = pooled - mu
    var = jnp.mean(xc * xc, axis=-1, keepdims=True)       # biased variance
    normed = xc * jax.lax.rsqrt(var + LN_EPS)
    y = normed * gamma_ref[...] + beta_ref[...]            # (TB, D) f32
    # Matmul runs in the weight dtype (f32 weights keep the full f32 path).
    logits = jnp.dot(y.astype(w_ref.dtype), w_ref[...],
                     preferred_element_type=jnp.float32)
    o_ref[...] = (logits + bias_ref[...].astype(jnp.float32)).astype(o_ref.dtype)


def _cls_head_fused_kernel(x_ref, gamma_ref, beta_ref, w_ref, bias_ref, o_ref,
                           *, inv_n):
    # Fast path: the whole token axis is one block; no accumulator needed and
    # the (full-extent) token block is never padded, so no masking either.
    pooled = jnp.sum(x_ref[...], axis=1, dtype=jnp.float32) * jnp.float32(inv_n)
    _pool_ln_linear(pooled, gamma_ref, beta_ref, w_ref, bias_ref, o_ref)


def _cls_head_stream_kernel(x_ref, gamma_ref, beta_ref, w_ref, bias_ref, o_ref,
                            acc_ref, *, inv_n, n_rem):
    # x_ref:     (TB, TN, D)  streamed activation tile (input dtype)
    # gamma/beta:(1, D)       LayerNorm params          (resident)
    # w_ref:     (D, Cp)      Linear weight, lane-padded (resident)
    # bias_ref:  (1, Cp)      Linear bias,   lane-padded (resident)
    # o_ref:     (TB, Cp)     logits tile
    # acc_ref:   (TB, D) f32  streaming token-sum accumulator (scratch)
    # n_rem:     None if N % TN == 0, else the number of valid tokens in the
    #            last (partial) token tile -- static, baked at trace time.
    t = pl.program_id(1)
    last = pl.num_programs(1) - 1

    @pl.when(t == 0)
    def _init():
        acc_ref[...] = jnp.zeros_like(acc_ref)

    if n_rem is None:
        acc_ref[...] += jnp.sum(x_ref[...], axis=1, dtype=jnp.float32)
    else:
        @pl.when(t < last)
        def _full_tile():
            acc_ref[...] += jnp.sum(x_ref[...], axis=1, dtype=jnp.float32)

        @pl.when(t == last)
        def _tail_tile():
            # Mask the out-of-bounds token tail of the partial edge block.
            xv = x_ref[...]
            tok = jax.lax.broadcasted_iota(jnp.int32, xv.shape, 1)
            xv = jnp.where(tok < n_rem, xv, jnp.zeros_like(xv))
            acc_ref[...] += jnp.sum(xv, axis=1, dtype=jnp.float32)

    @pl.when(t == last)
    def _finalize():
        pooled = acc_ref[...] * jnp.float32(inv_n)          # mean over tokens
        _pool_ln_linear(pooled, gamma_ref, beta_ref, w_ref, bias_ref, o_ref)


def classification_head(x, gamma, beta, w, b, *, tb=None, tn=None):
    """x: (B, N, D); gamma/beta: (D,); w: (D, C); b: (C,) -> (B, C)."""
    B, N, D = x.shape
    C = w.shape[1]
    x_itemsize = jnp.dtype(x.dtype).itemsize
    pack = max(8, 32 // x_itemsize)            # sublane packing for x.dtype

    # ---- batch tile --------------------------------------------------------
    if tb is not None:
        TB = _round_up(max(int(tb), 1), 8)
    elif B >= 16:
        # >=2 batch tiles so the "parallel" axis shards across v7x's 2 TCs;
        # cap at 128 (prefer larger TN; also matches v5e's 128x128 MXU).
        TB = min(_round_up(pl.cdiv(B, 2), 8), 128)
    else:
        TB = _round_up(B, 8)
    TB = max(1, min(TB, B))

    # ---- token tile (prefer large TN at a fixed VMEM budget) ----------------
    vmem_cap = _vmem_capacity_bytes()
    x_budget = int(0.40 * vmem_cap)            # for the double-buffered x tile
    if tn is not None:
        TN = max(int(tn), 1)
    else:
        TN = max(x_budget // (2 * TB * D * x_itemsize), pack)
    if TN >= N:
        TN = N
    else:
        TN = max((TN // pack) * pack, 8)
        if TN >= N:
            TN = N

    fast_path = (TN == N)
    n_rem = None if (fast_path or N % TN == 0) else N % TN
    num_tok_tiles = pl.cdiv(N, TN)
    num_b_tiles = pl.cdiv(B, TB)

    # ---- class-dim padding (lane-dense output / MXU N dim) ------------------
    C_pad = _round_up(C, 128)
    w_p = jnp.pad(w, ((0, 0), (0, C_pad - C))) if C_pad != C else w
    b_p = jnp.pad(b, (0, C_pad - C)) if C_pad != C else b
    gamma2 = gamma.reshape(1, D)
    beta2 = beta.reshape(1, D)
    bias2 = b_p.reshape(1, C_pad)

    # ---- VMEM accounting (residents counted double-buffered to be safe) -----
    w_itemsize = jnp.dtype(w_p.dtype).itemsize
    resident_bytes = (D * C_pad * w_itemsize
                      + 2 * D * jnp.dtype(gamma.dtype).itemsize
                      + C_pad * jnp.dtype(b_p.dtype).itemsize)
    vmem_need = (2 * TB * TN * D * x_itemsize     # x tiles (double-buffered)
                 + 2 * resident_bytes             # gamma/beta/W/bias
                 + TB * D * 4                     # accumulator scratch
                 + 2 * TB * C_pad * x_itemsize)   # output tiles
    vmem_limit = int(max(32 * 1024 * 1024,
                         min(int(0.75 * vmem_cap), 2 * vmem_need)))
    vmem_limit = int(max(vmem_limit, int(1.25 * vmem_need)))

    inv_n = 1.0 / N

    def _call(single_buffer_residents):
        res_kw = ({"pipeline_mode": pl.Buffered(1)}
                  if single_buffer_residents else {})
        if fast_path:
            kernel = functools.partial(_cls_head_fused_kernel, inv_n=inv_n)
            grid = (num_b_tiles,)
            in_specs = [
                pl.BlockSpec((TB, N, D), lambda i: (i, 0, 0)),         # x
                pl.BlockSpec((1, D), lambda i: (0, 0), **res_kw),      # gamma
                pl.BlockSpec((1, D), lambda i: (0, 0), **res_kw),      # beta
                pl.BlockSpec((D, C_pad), lambda i: (0, 0), **res_kw),  # W
                pl.BlockSpec((1, C_pad), lambda i: (0, 0), **res_kw),  # bias
            ]
            out_specs = pl.BlockSpec((TB, C_pad), lambda i: (i, 0))
            scratch = []
            dims = ("parallel",)
        else:
            kernel = functools.partial(_cls_head_stream_kernel,
                                       inv_n=inv_n, n_rem=n_rem)
            grid = (num_b_tiles, num_tok_tiles)
            in_specs = [
                pl.BlockSpec((TB, TN, D), lambda i, t: (i, t, 0)),        # x
                pl.BlockSpec((1, D), lambda i, t: (0, 0), **res_kw),      # gamma
                pl.BlockSpec((1, D), lambda i, t: (0, 0), **res_kw),      # beta
                pl.BlockSpec((D, C_pad), lambda i, t: (0, 0), **res_kw),  # W
                pl.BlockSpec((1, C_pad), lambda i, t: (0, 0), **res_kw),  # bias
            ]
            out_specs = pl.BlockSpec((TB, C_pad), lambda i, t: (i, 0))
            scratch = [pltpu.VMEM((TB, D), jnp.float32)]
            dims = ("parallel", "arbitrary")

        return pl.pallas_call(
            kernel,
            out_shape=jax.ShapeDtypeStruct((B, C_pad), x.dtype),
            grid_spec=pltpu.PrefetchScalarGridSpec(
                num_scalar_prefetch=0,
                grid=grid,
                in_specs=in_specs,
                out_specs=out_specs,
                scratch_shapes=scratch,
            ),
            compiler_params=pltpu.CompilerParams(
                dimension_semantics=dims,
                vmem_limit_bytes=vmem_limit,
            ),
        )(x, gamma2, beta2, w_p, bias2)

    try:
        out = jax.block_until_ready(_call(True))
    except Exception:
        # pipeline_mode=pl.Buffered(1) not available on this jax build; retry
        # with default (double-buffered) residents.
        out = jax.block_until_ready(_call(False))

    return out[:, :C]


def _reference(x, gamma, beta, w, b):
    pooled = jnp.mean(x.astype(jnp.float32), axis=1)
    mu = jnp.mean(pooled, axis=-1, keepdims=True)
    var = jnp.mean((pooled - mu) ** 2, axis=-1, keepdims=True)
    normed = (pooled - mu) / jnp.sqrt(var + LN_EPS)
    return (normed * gamma + beta) @ w + b


if __name__ == "__main__":
    def _make(key, B, N, D, C, dtype=jnp.float32):
        kx, kg, kb, kw, kbias = jax.random.split(key, 5)
        x = jax.random.normal(kx, (B, N, D), dtype=dtype)
        gamma = (jnp.ones((D,), jnp.float32)
                 + 0.01 * jax.random.normal(kg, (D,), dtype=jnp.float32))
        beta = 0.01 * jax.random.normal(kb, (D,), dtype=jnp.float32)
        w = 0.05 * jax.random.normal(kw, (D, C), dtype=jnp.float32)
        b = 0.05 * jax.random.normal(kbias, (C,), dtype=jnp.float32)
        return x, gamma, beta, w, b

    # --- test 1: module-sized small shapes (fused fast path, 1-D grid) -----
    x, g, bt, w, b = _make(jax.random.PRNGKey(0), B=2, N=8, D=32, C=10)
    out = jax.block_until_ready(classification_head(x, g, bt, w, b))
    ref = _reference(x, g, bt, w, b)
    assert out.shape == (2, 10)
    assert jnp.allclose(out, ref, atol=1e-5, rtol=1e-5), (out, ref)

    # --- test 2: forced small tiles (streamed token-reduction path) --------
    x2, g2, bt2, w2, b2 = _make(jax.random.PRNGKey(1), B=4, N=48, D=128, C=10)
    out2 = jax.block_until_ready(
        classification_head(x2, g2, bt2, w2, b2, tb=8, tn=16))
    ref2 = _reference(x2, g2, bt2, w2, b2)
    assert out2.shape == (4, 10)
    assert jnp.allclose(out2, ref2, atol=1e-5, rtol=1e-5), (out2, ref2)

    # --- test 3: ragged B and N (partial batch tile + masked token tail) ---
    x3, g3, bt3, w3, b3 = _make(jax.random.PRNGKey(2), B=10, N=50, D=64, C=7)
    out3 = jax.block_until_ready(
        classification_head(x3, g3, bt3, w3, b3, tb=8, tn=16))
    ref3 = _reference(x3, g3, bt3, w3, b3)
    assert out3.shape == (10, 7)
    assert jnp.allclose(out3, ref3, atol=1e-5, rtol=1e-5), (out3, ref3)

    print("KERNEL_OK")
</pallas_src>

<mosaic_0001>
module attributes {stable_mosaic.version = 11 : i64} {
  func.func @_cls_head_fused_kernel(%arg0: i32, %arg1: memref<2x8x32xf32, #tpu.memory_space<vmem>>, %arg2: memref<1x32xf32, #tpu.memory_space<vmem>>, %arg3: memref<1x32xf32, #tpu.memory_space<vmem>>, %arg4: memref<32x128xf32, #tpu.memory_space<vmem>>, %arg5: memref<1x128xf32, #tpu.memory_space<vmem>>, %arg6: memref<2x128xf32, #tpu.memory_space<vmem>>) attributes {dimension_semantics = [#tpu.dimension_semantics<parallel>], iteration_bounds = array<i64: 1>, scalar_prefetch = 0 : i64, scratch_operands = 0 : i64, tpu.core_type = #tpu.core_type<tc>, window_params = [{transform_indices = @transform_0, window_bounds = array<i64: 2, 8, 32>}, {pipeline_mode = #tpu.pipeline_mode<synchronous>, transform_indices = @transform_1, window_bounds = array<i64: 1, 32>}, {pipeline_mode = #tpu.pipeline_mode<synchronous>, transform_indices = @transform_2, window_bounds = array<i64: 1, 32>}, {pipeline_mode = #tpu.pipeline_mode<synchronous>, transform_indices = @transform_3, window_bounds = array<i64: 32, 128>}, {pipeline_mode = #tpu.pipeline_mode<synchronous>, transform_indices = @transform_4, window_bounds = array<i64: 1, 128>}, {transform_indices = @transform_5, window_bounds = array<i64: 2, 128>}]} {
    %c0 = arith.constant 0 : index
    %c0_0 = arith.constant 0 : index
    %c0_1 = arith.constant 0 : index
    %0 = vector.load %arg1[%c0, %c0_0, %c0_1] : memref<2x8x32xf32, #tpu.memory_space<vmem>>, vector<2x8x32xf32>
    %cst = arith.constant dense<0.000000e+00> : vector<2x32xf32>
    %1 = vector.multi_reduction <add>, %0, %cst [1] : vector<2x8x32xf32> to vector<2x32xf32>
    %cst_2 = arith.constant 1.250000e-01 : f32
    %2 = vector.broadcast %cst_2 : f32 to vector<2x32xf32>
    %3 = arith.mulf %1, %2 : vector<2x32xf32>
    %cst_3 = arith.constant dense<0.000000e+00> : vector<2xf32>
    %4 = vector.multi_reduction <add>, %3, %cst_3 [1] : vector<2x32xf32> to vector<2xf32>
    %5 = vector.shape_cast %4 : vector<2xf32> to vector<2x1xf32>
    %cst_4 = arith.constant 3.200000e+01 : f32
    %6 = vector.broadcast %cst_4 : f32 to vector<2x1xf32>
    %7 = arith.divf %5, %6 : vector<2x1xf32>
    %8 = vector.broadcast %7 : vector<2x1xf32> to vector<2x32xf32>
    %9 = arith.subf %3, %8 : vector<2x32xf32>
    %10 = arith.mulf %9, %9 : vector<2x32xf32>
    %cst_5 = arith.constant dense<0.000000e+00> : vector<2xf32>
    %11 = vector.multi_reduction <add>, %10, %cst_5 [1] : vector<2x32xf32> to vector<2xf32>
    %12 = vector.shape_cast %11 : vector<2xf32> to vector<2x1xf32>
    %cst_6 = arith.constant 3.200000e+01 : f32
    %13 = vector.broadcast %cst_6 : f32 to vector<2x1xf32>
    %14 = arith.divf %12, %13 : vector<2x1xf32>
    %cst_7 = arith.constant 9.99999974E-6 : f32
    %15 = vector.broadcast %cst_7 : f32 to vector<2x1xf32>
    %16 = arith.addf %14, %15 : vector<2x1xf32>
    %17 = math.rsqrt %16 : vector<2x1xf32>
    %18 = vector.broadcast %17 : vector<2x1xf32> to vector<2x32xf32>
    %19 = arith.mulf %9, %18 : vector<2x32xf32>
    %c0_8 = arith.constant 0 : index
    %c0_9 = arith.constant 0 : index
    %20 = vector.load %arg2[%c0_8, %c0_9] : memref<1x32xf32, #tpu.memory_space<vmem>>, vector<1x32xf32>
    %21 = vector.broadcast %20 : vector<1x32xf32> to vector<2x32xf32>
    %22 = arith.mulf %19, %21 : vector<2x32xf32>
    %c0_10 = arith.constant 0 : index
    %c0_11 = arith.constant 0 : index
    %23 = vector.load %arg3[%c0_10, %c0_11] : memref<1x32xf32, #tpu.memory_space<vmem>>, vector<1x32xf32>
    %24 = vector.broadcast %23 : vector<1x32xf32> to vector<2x32xf32>
    %25 = arith.addf %22, %24 : vector<2x32xf32>
    %c0_12 = arith.constant 0 : index
    %c0_13 = arith.constant 0 : index
    %26 = vector.load %arg4[%c0_12, %c0_13] : memref<32x128xf32, #tpu.memory_space<vmem>>, vector<32x128xf32>
    %cst_14 = arith.constant dense<0.000000e+00> : vector<2x128xf32>
    %27 = tpu.matmul %25, %26, %cst_14 {dimension_numbers = #tpu.dot_dimension_numbers<[1], [0], [0], [1], [0, 0, 1, 1], [], []>} : vector<2x32xf32>, vector<32x128xf32>, vector<2x128xf32> -> vector<2x128xf32>
    %c0_15 = arith.constant 0 : index
    %c0_16 = arith.constant 0 : index
    %28 = vector.load %arg5[%c0_15, %c0_16] : memref<1x128xf32, #tpu.memory_space<vmem>>, vector<1x128xf32>
    %29 = vector.broadcast %28 : vector<1x128xf32> to vector<2x128xf32>
    %30 = arith.addf %27, %29 : vector<2x128xf32>
    %c0_17 = arith.constant 0 : index
    %c0_18 = arith.constant 0 : index
    %31 = vector.load %arg6[%c0_17, %c0_18] : memref<2x128xf32, #tpu.memory_space<vmem>>, vector<2x128xf32>
    tpu.vector_store %arg6[%c0_17, %c0_18], %30 {strides = array<i32>} : memref<2x128xf32, #tpu.memory_space<vmem>>, vector<2x128xf32>,
    return
  }
  func.func @transform_0(%arg0: i32) -> (i32, i32, i32) {
    %c0_i32 = arith.constant 0 : i32
    %c0_i32_0 = arith.constant 0 : i32
    %c0_i32_1 = arith.constant 0 : i32
    return %arg0, %c0_i32, %c0_i32_0 : i32, i32, i32
  }
  func.func @transform_1(%arg0: i32) -> (i32, i32) {
    %c0_i32 = arith.constant 0 : i32
    %c0_i32_0 = arith.constant 0 : i32
    %c0_i32_1 = arith.constant 0 : i32
    return %c0_i32, %c0_i32_0 : i32, i32
  }
  func.func @transform_2(%arg0: i32) -> (i32, i32) {
    %c0_i32 = arith.constant 0 : i32
    %c0_i32_0 = arith.constant 0 : i32
    %c0_i32_1 = arith.constant 0 : i32
    return %c0_i32, %c0_i32_0 : i32, i32
  }
  func.func @transform_3(%arg0: i32) -> (i32, i32) {
    %c0_i32 = arith.constant 0 : i32
    %c0_i32_0 = arith.constant 0 : i32
    %c0_i32_1 = arith.constant 0 : i32
    return %c0_i32, %c0_i32_0 : i32, i32
  }
  func.func @transform_4(%arg0: i32) -> (i32, i32) {
    %c0_i32 = arith.constant 0 : i32
    %c0_i32_0 = arith.constant 0 : i32
    %c0_i32_1 = arith.constant 0 : i32
    return %c0_i32, %c0_i32_0 : i32, i32
  }
  func.func @transform_5(%arg0: i32) -> (i32, i32) {
    %c0_i32 = arith.constant 0 : i32
    %c0_i32_0 = arith.constant 0 : i32
    return %arg0, %c0_i32 : i32, i32
  }
}

module attributes {stable_mosaic.version = 11 : i64} {
  func.func @_cls_head_fused_kernel(%arg0: i32, %arg1: memref<2x8x32xf32, #tpu.memory_space<vmem>>, %arg2: memref<1x32xf32, #tpu.memory_space<vmem>>, %arg3: memref<1x32xf32, #tpu.memory_space<vmem>>, %arg4: memref<32x128xf32, #tpu.memory_space<vmem>>, %arg5: memref<1x128xf32, #tpu.memory_space<vmem>>, %arg6: memref<2x128xf32, #tpu.memory_space<vmem>>) attributes {dimension_semantics = [#tpu.dimension_semantics<parallel>], iteration_bounds = array<i64: 1>, scalar_prefetch = 0 : i64, scratch_operands = 0 : i64, tpu.core_type = #tpu.core_type<tc>, window_params = [{transform_indices = @transform_0, window_bounds = array<i64: 2, 8, 32>}, {pipeline_mode = #tpu.pipeline_mode<synchronous>, transform_indices = @transform_1, window_bounds = array<i64: 1, 32>}, {pipeline_mode = #tpu.pipeline_mode<synchronous>, transform_indices = @transform_2, window_bounds = array<i64: 1, 32>}, {pipeline_mode = #tpu.pipeline_mode<synchronous>, transform_indices = @transform_3, window_bounds = array<i64: 32, 128>}, {pipeline_mode = #tpu.pipeline_mode<synchronous>, transform_indices = @transform_4, window_bounds = array<i64: 1, 128>}, {transform_indices = @transform_5, window_bounds = array<i64: 2, 128>}]} {
    %c0 = arith.constant 0 : index
    %c0_0 = arith.constant 0 : index
    %c0_1 = arith.constant 0 : index
    %0 = vector.load %arg1[%c0, %c0_0, %c0_1] : memref<2x8x32xf32, #tpu.memory_space<vmem>>, vector<2x8x32xf32>
    %cst = arith.constant dense<0.000000e+00> : vector<2x32xf32>
    %1 = vector.multi_reduction <add>, %0, %cst [1] : vector<2x8x32xf32> to vector<2x32xf32>
    %cst_2 = arith.constant 1.250000e-01 : f32
    %2 = vector.broadcast %cst_2 : f32 to vector<2x32xf32>
    %3 = arith.mulf %1, %2 : vector<2x32xf32>
    %cst_3 = arith.constant dense<0.000000e+00> : vector<2xf32>
    %4 = vector.multi_reduction <add>, %3, %cst_3 [1] : vector<2x32xf32> to vector<2xf32>
    %5 = vector.shape_cast %4 : vector<2xf32> to vector<2x1xf32>
    %cst_4 = arith.constant 3.200000e+01 : f32
    %6 = vector.broadcast %cst_4 : f32 to vector<2x1xf32>
    %7 = arith.divf %5, %6 : vector<2x1xf32>
    %8 = vector.broadcast %7 : vector<2x1xf32> to vector<2x32xf32>
    %9 = arith.subf %3, %8 : vector<2x32xf32>
    %10 = arith.mulf %9, %9 : vector<2x32xf32>
    %cst_5 = arith.constant dense<0.000000e+00> : vector<2xf32>
    %11 = vector.multi_reduction <add>, %10, %cst_5 [1] : vector<2x32xf32> to vector<2xf32>
    %12 = vector.shape_cast %11 : vector<2xf32> to vector<2x1xf32>
    %cst_6 = arith.constant 3.200000e+01 : f32
    %13 = vector.broadcast %cst_6 : f32 to vector<2x1xf32>
    %14 = arith.divf %12, %13 : vector<2x1xf32>
    %cst_7 = arith.constant 9.99999974E-6 : f32
    %15 = vector.broadcast %cst_7 : f32 to vector<2x1xf32>
    %16 = arith.addf %14, %15 : vector<2x1xf32>
    %17 = math.rsqrt %16 : vector<2x1xf32>
    %18 = vector.broadcast %17 : vector<2x1xf32> to vector<2x32xf32>
    %19 = arith.mulf %9, %18 : vector<2x32xf32>
    %c0_8 = arith.constant 0 : index
    %c0_9 = arith.constant 0 : index
    %20 = vector.load %arg2[%c0_8, %c0_9] : memref<1x32xf32, #tpu.memory_space<vmem>>, vector<1x32xf32>
    %21 = vector.broadcast %20 : vector<1x32xf32> to vector<2x32xf32>
    %22 = arith.mulf %19, %21 : vector<2x32xf32>
    %c0_10 = arith.constant 0 : index
    %c0_11 = arith.constant 0 : index
    %23 = vector.load %arg3[%c0_10, %c0_11] : memref<1x32xf32, #tpu.memory_space<vmem>>, vector<1x32xf32>
    %24 = vector.broadcast %23 : vector<1x32xf32> to vector<2x32xf32>
    %25 = arith.addf %22, %24 : vector<2x32xf32>
    %c0_12 = arith.constant 0 : index
    %c0_13 = arith.constant 0 : index
    %26 = vector.load %arg4[%c0_12, %c0_13] : memref<32x128xf32, #tpu.memory_space<vmem>>, vector<32x128xf32>
    %cst_14 = arith.constant dense<0.000000e+00> : vector<2x128xf32>
    %27 = tpu.matmul %25, %26, %cst_14 {dimension_numbers = #tpu.dot_dimension_numbers<[1], [0], [0], [1], [0, 0, 1, 1], [], []>} : vector<2x32xf32>, vector<32x128xf32>, vector<2x128xf32> -> vector<2x128xf32>
    %c0_15 = arith.constant 0 : index
    %c0_16 = arith.constant 0 : index
    %28 = vector.load %arg5[%c0_15, %c0_16] : memref<1x128xf32, #tpu.memory_space<vmem>>, vector<1x128xf32>
    %29 = vector.broadcast %28 : vector<1x128xf32> to vector<2x128xf32>
    %30 = arith.addf %27, %29 : vector<2x128xf32>
    %c0_17 = arith.constant 0 : index
    %c0_18 = arith.constant 0 : index
    %31 = vector.load %arg6[%c0_17, %c0_18] : memref<2x128xf32, #tpu.memory_space<vmem>>, vector<2x128xf32>
    tpu.vector_store %arg6[%c0_17, %c0_18], %30 {strides = array<i32>} : memref<2x128xf32, #tpu.memory_space<vmem>>, vector<2x128xf32>,
    return
  }
  func.func @transform_0(%arg0: i32) -> (i32, i32, i32) {
    %c0_i32 = arith.constant 0 : i32
    %c0_i32_0 = arith.constant 0 : i32
    %c0_i32_1 = arith.constant 0 : i32
    return %arg0, %c0_i32, %c0_i32_0 : i32, i32, i32
  }
  func.func @transform_1(%arg0: i32) -> (i32, i32) {
    %c0_i32 = arith.constant 0 : i32
    %c0_i32_0 = arith.constant 0 : i32
    %c0_i32_1 = arith.constant 0 : i32
    return %c0_i32, %c0_i32_0 : i32, i32
  }
  func.func @transform_2(%arg0: i32) -> (i32, i32) {
    %c0_i32 = arith.constant 0 : i32
    %c0_i32_0 = arith.constant 0 : i32
    %c0_i32_1 = arith.constant 0 : i32
    return %c0_i32, %c0_i32_0 : i32, i32
  }
  func.func @transform_3(%arg0: i32) -> (i32, i32) {
    %c0_i32 = arith.constant 0 : i32
    %c0_i32_0 = arith.constant 0 : i32
    %c0_i32_1 = arith.constant 0 : i32
    return %c0_i32, %c0_i32_0 : i32, i32
  }
  func.func @transform_4(%arg0: i32) -> (i32, i32) {
    %c0_i32 = arith.constant 0 : i32
    %c0_i32_0 = arith.constant 0 : i32
    %c0_i32_1 = arith.constant 0 : i32
    return %c0_i32, %c0_i32_0 : i32, i32
  }
  func.func @transform_5(%arg0: i32) -> (i32, i32) {
    %c0_i32 = arith.constant 0 : i32
    %c0_i32_0 = arith.constant 0 : i32
    return %arg0, %c0_i32 : i32, i32
  }
}

</mosaic_0001>

<llo_original>
// kernel: tpu_custom_call.1
$region0: #{tpu_custom_call.1}
  #allocation0 [shape = 'u32[]', space=smem, size = 0x4, offset = 0x4, fixed_abs, tag = 'smem constant byte address 0x4 - core index']
  #allocation1 [shape = 'u32[144,128]{1,0:T(1,128)}', space=vmem, size = 0x12000, scoped, tag = 'internal scratch']
  %s0 = inlined_call_operand.hbm [shape: f32[2,8,32], index: 0, kind: input, shape index: {}]
  %s1 = inlined_call_operand.vmem [shape: f32[1,32], index: 1, kind: input, shape index: {}]
  %s2 = inlined_call_operand.vmem [shape: f32[1,32], index: 2, kind: input, shape index: {}]
  %s3 = inlined_call_operand.hbm [shape: f32[32,128], index: 3, kind: input, shape index: {}]
  %s4 = inlined_call_operand.vmem [shape: f32[1,128], index: 4, kind: input, shape index: {}]
  %s5 = inlined_call_operand.hbm [shape: f32[2,128], index: 5, kind: output, shape index: {}]
  %s6 = sld [smem:[#allocation0]]
  $region38: #{tpu_custom_call.1} parent=0
    _
  %s8 = ssub.s32 1, %s6
  %s9 = scalar_select 0, %s8, %s6
  $region1: #{tpu_custom_call.1} parent=0
    #allocation2 [shape = 'u8[8192]{0}', space=vmem, size = 0x2000, scoped, tag = 'input window, operand 0, single buffered']
    #allocation3 [shape = 's32[1]{0}', space=sflag, size = 0x4, scoped, tag = 'scoped memory for tpu_custom_call.1']
    #allocation4 [shape = 's32[1]{0}', space=sflag, size = 0x4, scoped, tag = 'scoped memory for tpu_custom_call.1']
    #allocation5 [shape = 'u8[16384]{0}', space=vmem, size = 0x4000, scoped, tag = 'input window, operand 3, single buffered']
    #allocation6 [shape = 's32[1]{0}', space=sflag, size = 0x4, scoped, tag = 'scoped memory for tpu_custom_call.1']
    #allocation7 [shape = 'u8[1024]{0}', space=vmem, size = 0x400, scoped, tag = 'output window, operand 0, single buffered']
    %10 = vsyncpa [#allocation3], 0
    %11 = vsyncpa [#allocation6], 0
    %12 = vsyncpa [#allocation4], 0
    // Predicated region
    $region2: #{tpu_custom_call.1} parent=1 // pred_check
      _
    $region3: #{tpu_custom_call.1} parent=1 // pred_check_branch
      %14 = sbr.rel (0) target = $region5
    $region4: #{tpu_custom_call.1} parent=1 // pred_region
      %s16 = ssub.s32 256, 256
      %17 = vsyncadd [#allocation3], %s16
      %s18 = sshll.u32 [#allocation2], 4
      %s19 = int_to_ptr.vmem [resolvable:$true] %s18
      %24 = dma.hbm_to_vmem [thread:$0]  %s0, 256, %s19, [#allocation3], 128, 128, 8
    $region5: #{tpu_custom_call.1} parent=1 // pred_fallthru
      _
    // Predicated region
    $region6: #{tpu_custom_call.1} parent=1 // pred_check
      _
    $region7: #{tpu_custom_call.1} parent=1 // pred_check_branch
      %26 = sbr.rel (0) target = $region9
    $region8: #{tpu_custom_call.1} parent=1 // pred_region
      _
    $region9: #{tpu_custom_call.1} parent=1 // pred_fallthru
      _
    // Predicated region
    $region10: #{tpu_custom_call.1} parent=1 // pred_check
      _
    $region11: #{tpu_custom_call.1} parent=1 // pred_check_branch
      %28 = sbr.rel (0) target = $region13
    $region12: #{tpu_custom_call.1} parent=1 // pred_region
      _
    $region13: #{tpu_custom_call.1} parent=1 // pred_fallthru
      _
    // Predicated region
    $region14: #{tpu_custom_call.1} parent=1 // pred_check
      _
    $region15: #{tpu_custom_call.1} parent=1 // pred_check_branch
      %30 = sbr.rel (0) target = $region17
    $region16: #{tpu_custom_call.1} parent=1 // pred_region
      %s32 = ssub.s32 512, 512
      %33 = vsyncadd [#allocation6], %s32
      %s34 = sshll.u32 [#allocation5], 4
      %s35 = int_to_ptr.vmem [resolvable:$true] %s34
      %40 = dma.hbm_to_vmem [thread:$0]  %s3, 512, %s35, [#allocation6], 128, 128, 8
    $region17: #{tpu_custom_call.1} parent=1 // pred_fallthru
      _
    // Predicated region
    $region18: #{tpu_custom_call.1} parent=1 // pred_check
      _
    $region19: #{tpu_custom_call.1} parent=1 // pred_check_branch
      %42 = sbr.rel (0) target = $region21
    $region20: #{tpu_custom_call.1} parent=1 // pred_region
      _
    $region21: #{tpu_custom_call.1} parent=1 // pred_fallthru
      _
    // Predicated region
    $region22: #{tpu_custom_call.1} parent=1 // pred_check
      _
    $region23: #{tpu_custom_call.1} parent=1 // pred_check_branch
      %44 = sbr.rel (0) target = $region25
    $region24: #{tpu_custom_call.1} parent=1 // pred_region
      %45 = dma.done [#allocation3], 256
    $region25: #{tpu_custom_call.1} parent=1 // pred_fallthru
      _
    // Predicated region
    $region26: #{tpu_custom_call.1} parent=1 // pred_check
      _
    $region27: #{tpu_custom_call.1} parent=1 // pred_check_branch
      %47 = sbr.rel (0) target = $region29
    $region28: #{tpu_custom_call.1} parent=1 // pred_region
      %48 = dma.done [#allocation6], 512
    $region29: #{tpu_custom_call.1} parent=1 // pred_fallthru
      _
    %v49 = vld [vmem:[#allocation2] sm:$0xff]
    %v50 = vld [vmem:[#allocation2 + $0x8] sm:$0xff]
    %vm51 = vcmask 261120
    %v52 = vsel %vm51, %v49, 0.0
    %v53 = vrot.slane %v52, 4
    %v54 = vadd.f32 %v52, %v53
    %v55 = vrot.slane %v54, 2
    %v56 = vadd.f32 %v54, %v55
    %v57 = vrot.slane %v56, 1
    %v58 = vadd.f32 %v56, %v57
    %v59 = vsel %vm51, %v50, 0.0
    %v60 = vrot.slane %v59, 4
    %v61 = vadd.f32 %v59, %v60
    %v62 = vrot.slane %v61, 2
    %v63 = vadd.f32 %v61, %v62
    %v64 = vrot.slane %v63, 1
    %v65 = vadd.f32 %v63, %v64
    %v66 = vmul.f32 %v58, 0.125
    %v67 = vmul.f32 %v65, 0.125
    %vm70 = vcmask 1041409
    %v71 = vsel %vm70, %v67, %v66
    %vm73 = vcmask 254976
    %v74 = vsel %vm73, %v71, 0.0
    %75 = vadd.xlane.f32.xlu0 %v74
    %v76 = vpop.xlane.xlu0 %75
    %v77 = vrcp.pop 32.0
    %v78 = vmul.f32 %v76, %v77
    %v80 = vrot.slane %v78, 1
    %v83 = vsub.f32 %v66, %v78
    %v84 = vsub.f32 %v67, %v80
    %v85 = vmul.f32 %v83, %v83
    %v86 = vmul.f32 %v84, %v84
    %v89 = vrot.slane %v86, 7
    %v90 = vsel %vm70, %v89, %v85
    %v92 = vsel %vm73, %v90, 0.0
    %93 = vadd.xlane.f32.xlu0 %v92
    %v94 = vpop.xlane.xlu0 %93
    %v95 = vmul.f32 %v94, %v77
    %v96 = vadd.f32 %v95, 1e-05
    %v97 = vrsqrt.pop %v96
    %v99 = vrot.slane %v97, 1
    %v102 = vmul.f32 %v83, %v97
    %v103 = vmul.f32 %v84, %v99
    %v104 = vld [vmem:[%s1] sm:$0x1]
    %v106 = vlaneseq
    %v107 = vshrl.u32 %v106, 7
    %v108 = vsub.s32 0, %v107
    %v109 = vrot.slane %v104, %v108
    %v111 = vmul.f32 %v102, %v109
    %v112 = vmul.f32 %v103, %v109
    %v113 = vld [vmem:[%s2] sm:$0x1]
    %v115 = vlaneseq
    %v116 = vshrl.u32 %v115, 7
    %v117 = vsub.s32 0, %v116
    %v118 = vrot.slane %v113, %v117
    %v120 = vadd.f32 %v111, %v118
    %v121 = vadd.f32 %v112, %v118
    %v122 = vld [vmem:[#allocation5] sm:$0xff]
    %v123 = vld [vmem:[#allocation5 + $0x8] sm:$0xff]
    %v124 = vld [vmem:[#allocation5 + $0x10] sm:$0xff]
    %v125 = vld [vmem:[#allocation5 + $0x18] sm:$0xff]
    %v126 = vld [vmem:[%s4] sm:$0x1]
    %v128 = vlaneseq
    %v129 = vshrl.u32 %v128, 7
    %v130 = vsub.s32 0, %v129
    %v131 = vrot.slane %v126, %v130
    %v135 = vrot.slane %v121, 7
    %v136 = vsel %vm70, %v135, %v120
    %v137 = vsel %vm51, %v136, 0
    %139 = vmatprep.subr.mxu0 0.0
    %140 = vmatpush1.msra.mxu0 %v122
    %141 = vmatprep.subr.mxu0 0.0
    %142 = vmatpush1.msra.mxu0 %v123
    %143 = vmatprep.subr.mxu0 0.0
    %144 = vmatpush1.msra.mxu0 %v124
    %145 = vmatprep.subr.mxu0 0.0
    %146 = vmatpush1.msra.mxu0 %v125
    %147 = vmatprep.subr.mxu0 0.0
    %148 = vmatpush1.msra.mxu0 0.0
    %149 = vmatprep.subr.mxu0 0.0
    %150 = vmatpush1.msra.mxu0 0.0
    %151 = vmatprep.subr.mxu0 0.0
    %152 = vmatpush1.msra.mxu0 0.0
    %153 = vmatprep.subr.mxu0 0.0
    %154 = vmatpush1.msra.mxu0 0.0
    %155 = vmatprep.subr.mxu0 0.0
    %156 = vmatpush1.msra.mxu0 0.0
    %157 = vmatprep.subr.mxu0 0.0
    %158 = vmatpush1.msra.mxu0 0.0
    %159 = vmatprep.subr.mxu0 0.0
    %160 = vmatpush1.msra.mxu0 0.0
    %161 = vmatprep.subr.mxu0 0.0
    %162 = vmatpush1.msra.mxu0 0.0
    %163 = vmatprep.subr.mxu0 0.0
    %164 = vmatpush1.msra.mxu0 0.0
    %165 = vmatprep.subr.mxu0 0.0
    %166 = vmatpush1.msra.mxu0 0.0
    %167 = vmatprep.subr.mxu0 0.0
    %168 = vmatpush1.msra.mxu0 0.0
    %169 = vmatprep.subr.mxu0 0.0
    %170 = vmatpush1.msra.mxu0 0.0
    %171 = vmatprep.subr.mxu0 0.0
    %172 = vmatpush1.msra.mxu0 0.0
    %173 = vmatprep.subr.mxu0 0.0
    %174 = vmatpush1.msra.mxu0 0.0
    %175 = vmatprep.subr.mxu0 0.0
    %176 = vmatpush1.msra.mxu0 0.0
    %177 = vmatprep.subr.mxu0 0.0
    %178 = vmatpush1.msra.mxu0 0.0
    %179 = vmatprep.subr.mxu0 0.0
    %180 = vmatpush1.msra.mxu0 0.0
    %181 = vmatprep.subr.mxu0 0.0
    %182 = vmatpush1.msra.mxu0 0.0
    %183 = vmatprep.subr.mxu0 0.0
    %184 = vmatpush1.msra.mxu0 0.0
    %185 = vmatprep.subr.mxu0 0.0
    %186 = vmatpush1.msra.mxu0 0.0
    %187 = vmatprep.subr.mxu0 0.0
    %188 = vmatpush1.msra.mxu0 0.0
    %189 = vmatprep.subr.mxu0 0.0
    %190 = vmatpush1.msra.mxu0 0.0
    %191 = vmatprep.subr.mxu0 0.0
    %192 = vmatpush1.msra.mxu0 0.0
    %193 = vmatprep.subr.mxu0 0.0
    %194 = vmatpush1.msra.mxu0 0.0
    %195 = vmatprep.subr.mxu0 0.0
    %196 = vmatpush1.msra.mxu0 0.0
    %197 = vmatprep.subr.mxu0 0.0
    %198 = vmatpush1.msra.mxu0 0.0
    %199 = vmatprep.subr.mxu0 0.0
    %200 = vmatpush1.msra.mxu0 0.0
    %201 = vmatprep.subr.mxu0 0.0
    %202 = vmatpush1.msra.mxu0 0.0
    %203 = vmatprep.mubr.f32.mxu0 0.0
    %204 = vmatmul.mubr.f32.gmra.mrb[0].mxu0 %v137
    %v205 = vpop.f32.mrb[0].mxu0
    %v206 = vadd.f32 %v131, %v205
    %v207 = vpop.f32.mrb[0].mxu0
    %208 = vdwg.mxu0
    %209 = vst [vmem:[#allocation7] sm:$0x3] %v206
    // Predicated region
    $region30: #{tpu_custom_call.1} parent=1 // pred_check
      _
    $region31: #{tpu_custom_call.1} parent=1 // pred_check_branch
      %211 = sbr.rel (0) target = $region33
    $region32: #{tpu_custom_call.1} parent=1 // pred_region
      %s213 = ssub.s32 32, 32
      %214 = vsyncadd [#allocation4], %s213
      %s216 = sshll.u32 [#allocation7], 4
      %s217 = int_to_ptr.vmem [resolvable:$true] %s216
      %219 = dma.vmem_to_hbm [thread:$0]  %s217, 32, %s5, [#allocation4]
    $region33: #{tpu_custom_call.1} parent=1 // pred_fallthru
      _
    // Predicated region
    $region34: #{tpu_custom_call.1} parent=1 // pred_check
      _
    $region35: #{tpu_custom_call.1} parent=1 // pred_check_branch
      %221 = sbr.rel (0) target = $region37
    $region36: #{tpu_custom_call.1} parent=1 // pred_region
      %222 = dma.done [#allocation4], 32
    $region37: #{tpu_custom_call.1} parent=1 // pred_fallthru
      _
    %223 = vsyncpa [#allocation3], 1
    %224 = vsyncpa [#allocation6], 1
    %225 = vsyncpa [#allocation4], 1

// kernel: tpu_custom_call.1
$region0: #{tpu_custom_call.1}
  #allocation0 [shape = 'u32[]', space=smem, size = 0x4, offset = 0x4, fixed_abs, tag = 'smem constant byte address 0x4 - core index']
  #allocation1 [shape = 'u32[144,128]{1,0:T(1,128)}', space=vmem, size = 0x12000, scoped, tag = 'internal scratch']
  %s0 = inlined_call_operand.hbm [shape: f32[2,8,32], index: 0, kind: input, shape index: {}]
  %s1 = inlined_call_operand.vmem [shape: f32[1,32], index: 1, kind: input, shape index: {}]
  %s2 = inlined_call_operand.vmem [shape: f32[1,32], index: 2, kind: input, shape index: {}]
  %s3 = inlined_call_operand.hbm [shape: f32[32,128], index: 3, kind: input, shape index: {}]
  %s4 = inlined_call_operand.vmem [shape: f32[1,128], index: 4, kind: input, shape index: {}]
  %s5 = inlined_call_operand.hbm [shape: f32[2,128], index: 5, kind: output, shape index: {}]
  %s6 = sld [smem:[#allocation0]]
  $region38: #{tpu_custom_call.1} parent=0
    _
  %s8 = ssub.s32 1, %s6
  %s9 = scalar_select 0, %s8, %s6
  $region1: #{tpu_custom_call.1} parent=0
    #allocation2 [shape = 'u8[8192]{0}', space=vmem, size = 0x2000, scoped, tag = 'input window, operand 0, single buffered']
    #allocation3 [shape = 's32[1]{0}', space=sflag, size = 0x4, scoped, tag = 'scoped memory for tpu_custom_call.1']
    #allocation4 [shape = 's32[1]{0}', space=sflag, size = 0x4, scoped, tag = 'scoped memory for tpu_custom_call.1']
    #allocation5 [shape = 'u8[16384]{0}', space=vmem, size = 0x4000, scoped, tag = 'input window, operand 3, single buffered']
    #allocation6 [shape = 's32[1]{0}', space=sflag, size = 0x4, scoped, tag = 'scoped memory for tpu_custom_call.1']
    #allocation7 [shape = 'u8[1024]{0}', space=vmem, size = 0x400, scoped, tag = 'output window, operand 0, single buffered']
    %10 = vsyncpa [#allocation3], 0
    %11 = vsyncpa [#allocation6], 0
    %12 = vsyncpa [#allocation4], 0
    // Predicated region
    $region2: #{tpu_custom_call.1} parent=1 // pred_check
      _
    $region3: #{tpu_custom_call.1} parent=1 // pred_check_branch
      %14 = sbr.rel (0) target = $region5
    $region4: #{tpu_custom_call.1} parent=1 // pred_region
      %s16 = ssub.s32 256, 256
      %17 = vsyncadd [#allocation3], %s16
      %s18 = sshll.u32 [#allocation2], 4
      %s19 = int_to_ptr.vmem [resolvable:$true] %s18
      %24 = dma.hbm_to_vmem [thread:$0]  %s0, 256, %s19, [#allocation3], 128, 128, 8
    $region5: #{tpu_custom_call.1} parent=1 // pred_fallthru
      _
    // Predicated region
    $region6: #{tpu_custom_call.1} parent=1 // pred_check
      _
    $region7: #{tpu_custom_call.1} parent=1 // pred_check_branch
      %26 = sbr.rel (0) target = $region9
    $region8: #{tpu_custom_call.1} parent=1 // pred_region
      _
    $region9: #{tpu_custom_call.1} parent=1 // pred_fallthru
      _
    // Predicated region
    $region10: #{tpu_custom_call.1} parent=1 // pred_check
      _
    $region11: #{tpu_custom_call.1} parent=1 // pred_check_branch
      %28 = sbr.rel (0) target = $region13
    $region12: #{tpu_custom_call.1} parent=1 // pred_region
      _
    $region13: #{tpu_custom_call.1} parent=1 // pred_fallthru
      _
    // Predicated region
    $region14: #{tpu_custom_call.1} parent=1 // pred_check
      _
    $region15: #{tpu_custom_call.1} parent=1 // pred_check_branch
      %30 = sbr.rel (0) target = $region17
    $region16: #{tpu_custom_call.1} parent=1 // pred_region
      %s32 = ssub.s32 512, 512
      %33 = vsyncadd [#allocation6], %s32
      %s34 = sshll.u32 [#allocation5], 4
      %s35 = int_to_ptr.vmem [resolvable:$true] %s34
      %40 = dma.hbm_to_vmem [thread:$0]  %s3, 512, %s35, [#allocation6], 128, 128, 8
    $region17: #{tpu_custom_call.1} parent=1 // pred_fallthru
      _
    // Predicated region
    $region18: #{tpu_custom_call.1} parent=1 // pred_check
      _
    $region19: #{tpu_custom_call.1} parent=1 // pred_check_branch
      %42 = sbr.rel (0) target = $region21
    $region20: #{tpu_custom_call.1} parent=1 // pred_region
      _
    $region21: #{tpu_custom_call.1} parent=1 // pred_fallthru
      _
    // Predicated region
    $region22: #{tpu_custom_call.1} parent=1 // pred_check
      _
    $region23: #{tpu_custom_call.1} parent=1 // pred_check_branch
      %44 = sbr.rel (0) target = $region25
    $region24: #{tpu_custom_call.1} parent=1 // pred_region
      %45 = dma.done [#allocation3], 256
    $region25: #{tpu_custom_call.1} parent=1 // pred_fallthru
      _
    // Predicated region
    $region26: #{tpu_custom_call.1} parent=1 // pred_check
      _
    $region27: #{tpu_custom_call.1} parent=1 // pred_check_branch
      %47 = sbr.rel (0) target = $region29
    $region28: #{tpu_custom_call.1} parent=1 // pred_region
      %48 = dma.done [#allocation6], 512
    $region29: #{tpu_custom_call.1} parent=1 // pred_fallthru
      _
    %v49 = vld [vmem:[#allocation2] sm:$0xff]
    %v50 = vld [vmem:[#allocation2 + $0x8] sm:$0xff]
    %vm51 = vcmask 261120
    %v52 = vsel %vm51, %v49, 0.0
    %v53 = vrot.slane %v52, 4
    %v54 = vadd.f32 %v52, %v53
    %v55 = vrot.slane %v54, 2
    %v56 = vadd.f32 %v54, %v55
    %v57 = vrot.slane %v56, 1
    %v58 = vadd.f32 %v56, %v57
    %v59 = vsel %vm51, %v50, 0.0
    %v60 = vrot.slane %v59, 4
    %v61 = vadd.f32 %v59, %v60
    %v62 = vrot.slane %v61, 2
    %v63 = vadd.f32 %v61, %v62
    %v64 = vrot.slane %v63, 1
    %v65 = vadd.f32 %v63, %v64
    %v66 = vmul.f32 %v58, 0.125
    %v67 = vmul.f32 %v65, 0.125
    %vm70 = vcmask 1041409
    %v71 = vsel %vm70, %v67, %v66
    %vm73 = vcmask 254976
    %v74 = vsel %vm73, %v71, 0.0
    %75 = vadd.xlane.f32.xlu0 %v74
    %v76 = vpop.xlane.xlu0 %75
    %v77 = vrcp.pop 32.0
    %v78 = vmul.f32 %v76, %v77
    %v80 = vrot.slane %v78, 1
    %v83 = vsub.f32 %v66, %v78
    %v84 = vsub.f32 %v67, %v80
    %v85 = vmul.f32 %v83, %v83
    %v86 = vmul.f32 %v84, %v84
    %v89 = vrot.slane %v86, 7
    %v90 = vsel %vm70, %v89, %v85
    %v92 = vsel %vm73, %v90, 0.0
    %93 = vadd.xlane.f32.xlu0 %v92
    %v94 = vpop.xlane.xlu0 %93
    %v95 = vmul.f32 %v94, %v77
    %v96 = vadd.f32 %v95, 1e-05
    %v97 = vrsqrt.pop %v96
    %v99 = vrot.slane %v97, 1
    %v102 = vmul.f32 %v83, %v97
    %v103 = vmul.f32 %v84, %v99
    %v104 = vld [vmem:[%s1] sm:$0x1]
    %v106 = vlaneseq
    %v107 = vshrl.u32 %v106, 7
    %v108 = vsub.s32 0, %v107
    %v109 = vrot.slane %v104, %v108
    %v111 = vmul.f32 %v102, %v109
    %v112 = vmul.f32 %v103, %v109
    %v113 = vld [vmem:[%s2] sm:$0x1]
    %v115 = vlaneseq
    %v116 = vshrl.u32 %v115, 7
    %v117 = vsub.s32 0, %v116
    %v118 = vrot.slane %v113, %v117
    %v120 = vadd.f32 %v111, %v118
    %v121 = vadd.f32 %v112, %v118
    %v122 = vld [vmem:[#allocation5] sm:$0xff]
    %v123 = vld [vmem:[#allocation5 + $0x8] sm:$0xff]
    %v124 = vld [vmem:[#allocation5 + $0x10] sm:$0xff]
    %v125 = vld [vmem:[#allocation5 + $0x18] sm:$0xff]
    %v126 = vld [vmem:[%s4] sm:$0x1]
    %v128 = vlaneseq
    %v129 = vshrl.u32 %v128, 7
    %v130 = vsub.s32 0, %v129
    %v131 = vrot.slane %v126, %v130
    %v135 = vrot.slane %v121, 7
    %v136 = vsel %vm70, %v135, %v120
    %v137 = vsel %vm51, %v136, 0
    %139 = vmatprep.subr.mxu0 0.0
    %140 = vmatpush1.msra.mxu0 %v122
    %141 = vmatprep.subr.mxu0 0.0
    %142 = vmatpush1.msra.mxu0 %v123
    %143 = vmatprep.subr.mxu0 0.0
    %144 = vmatpush1.msra.mxu0 %v124
    %145 = vmatprep.subr.mxu0 0.0
    %146 = vmatpush1.msra.mxu0 %v125
    %147 = vmatprep.subr.mxu0 0.0
    %148 = vmatpush1.msra.mxu0 0.0
    %149 = vmatprep.subr.mxu0 0.0
    %150 = vmatpush1.msra.mxu0 0.0
    %151 = vmatprep.subr.mxu0 0.0
    %152 = vmatpush1.msra.mxu0 0.0
    %153 = vmatprep.subr.mxu0 0.0
    %154 = vmatpush1.msra.mxu0 0.0
    %155 = vmatprep.subr.mxu0 0.0
    %156 = vmatpush1.msra.mxu0 0.0
    %157 = vmatprep.subr.mxu0 0.0
    %158 = vmatpush1.msra.mxu0 0.0
    %159 = vmatprep.subr.mxu0 0.0
    %160 = vmatpush1.msra.mxu0 0.0
    %161 = vmatprep.subr.mxu0 0.0
    %162 = vmatpush1.msra.mxu0 0.0
    %163 = vmatprep.subr.mxu0 0.0
    %164 = vmatpush1.msra.mxu0 0.0
    %165 = vmatprep.subr.mxu0 0.0
    %166 = vmatpush1.msra.mxu0 0.0
    %167 = vmatprep.subr.mxu0 0.0
    %168 = vmatpush1.msra.mxu0 0.0
    %169 = vmatprep.subr.mxu0 0.0
    %170 = vmatpush1.msra.mxu0 0.0
    %171 = vmatprep.subr.mxu0 0.0
    %172 = vmatpush1.msra.mxu0 0.0
    %173 = vmatprep.subr.mxu0 0.0
    %174 = vmatpush1.msra.mxu0 0.0
    %175 = vmatprep.subr.mxu0 0.0
    %176 = vmatpush1.msra.mxu0 0.0
    %177 = vmatprep.subr.mxu0 0.0
    %178 = vmatpush1.msra.mxu0 0.0
    %179 = vmatprep.subr.mxu0 0.0
    %180 = vmatpush1.msra.mxu0 0.0
    %181 = vmatprep.subr.mxu0 0.0
    %182 = vmatpush1.msra.mxu0 0.0
    %183 = vmatprep.subr.mxu0 0.0
    %184 = vmatpush1.msra.mxu0 0.0
    %185 = vmatprep.subr.mxu0 0.0
    %186 = vmatpush1.msra.mxu0 0.0
    %187 = vmatprep.subr.mxu0 0.0
    %188 = vmatpush1.msra.mxu0 0.0
    %189 = vmatprep.subr.mxu0 0.0
    %190 = vmatpush1.msra.mxu0 0.0
    %191 = vmatprep.subr.mxu0 0.0
    %192 = vmatpush1.msra.mxu0 0.0
    %193 = vmatprep.subr.mxu0 0.0
    %194 = vmatpush1.msra.mxu0 0.0
    %195 = vmatprep.subr.mxu0 0.0
    %196 = vmatpush1.msra.mxu0 0.0
    %197 = vmatprep.subr.mxu0 0.0
    %198 = vmatpush1.msra.mxu0 0.0
    %199 = vmatprep.subr.mxu0 0.0
    %200 = vmatpush1.msra.mxu0 0.0
    %201 = vmatprep.subr.mxu0 0.0
    %202 = vmatpush1.msra.mxu0 0.0
    %203 = vmatprep.mubr.f32.mxu0 0.0
    %204 = vmatmul.mubr.f32.gmra.mrb[0].mxu0 %v137
    %v205 = vpop.f32.mrb[0].mxu0
    %v206 = vadd.f32 %v131, %v205
    %v207 = vpop.f32.mrb[0].mxu0
    %208 = vdwg.mxu0
    %209 = vst [vmem:[#allocation7] sm:$0x3] %v206
    // Predicated region
    $region30: #{tpu_custom_call.1} parent=1 // pred_check
      _
    $region31: #{tpu_custom_call.1} parent=1 // pred_check_branch
      %211 = sbr.rel (0) target = $region33
    $region32: #{tpu_custom_call.1} parent=1 // pred_region
      %s213 = ssub.s32 32, 32
      %214 = vsyncadd [#allocation4], %s213
      %s216 = sshll.u32 [#allocation7], 4
      %s217 = int_to_ptr.vmem [resolvable:$true] %s216
      %219 = dma.vmem_to_hbm [thread:$0]  %s217, 32, %s5, [#allocation4]
    $region33: #{tpu_custom_call.1} parent=1 // pred_fallthru
      _
    // Predicated region
    $region34: #{tpu_custom_call.1} parent=1 // pred_check
      _
    $region35: #{tpu_custom_call.1} parent=1 // pred_check_branch
      %221 = sbr.rel (0) target = $region37
    $region36: #{tpu_custom_call.1} parent=1 // pred_region
      %222 = dma.done [#allocation4], 32
    $region37: #{tpu_custom_call.1} parent=1 // pred_fallthru
      _
    %223 = vsyncpa [#allocation3], 1
    %224 = vsyncpa [#allocation6], 1
    %225 = vsyncpa [#allocation4], 1

</llo_original>
